<compile_context>
chip_gen: v5e
topology: v5e:2x2
jax: 0.10.0
libtpu: 0.0.40
codegen_flags: <defaults>
</compile_context>

<pallas_src>
import functools

import jax
import jax.numpy as jnp
from jax import lax
from jax.experimental import pallas as pl
from jax.experimental.pallas import tpu as pltpu


def _decoder_kernel(x_ref, wi_ref, bih_ref, wh_ref, wo_ref, bo_ref, out_ref,
                    *, num_decoder, mxu_dtype):
    # Loop-invariant input projection: inputs @ Wi^T + (bi + bh), once.
    x = x_ref[...].astype(mxu_dtype)
    xi_b = (jnp.dot(x, wi_ref[...], preferred_element_type=jnp.float32)
            + bih_ref[...])

    # Peeled first iteration: ht0 == 0  =>  ht1 = tanh(0 @ Wh + xi_b) = tanh(xi_b).
    ht = jnp.tanh(xi_b)

    # Hoist the Wh load; recurrence body is matmul + add + tanh.
    wh = wh_ref[...]

    def body(_, ht):
        p = jnp.dot(ht.astype(mxu_dtype), wh,
                    preferred_element_type=jnp.float32)
        return jnp.tanh(p + xi_b)

    # num_decoder is a compile-time int; unroll the short recurrence so the
    # LLO scheduler can overlap MXU pushes and EUP tanh across iterations.
    ht = lax.fori_loop(0, num_decoder - 1, body, ht, unroll=True)

    # Output projection + numerically-stable softmax over the output axis.
    # Padded output lanes carry bo = f32 finfo.min -> exp underflows to 0.
    logits = (jnp.dot(ht.astype(mxu_dtype), wo_ref[...],
                      preferred_element_type=jnp.float32) + bo_ref[...])
    m = jnp.max(logits, axis=1, keepdims=True)
    e = jnp.exp(logits - m)
    denom = jnp.sum(e, axis=1, keepdims=True)
    # EUP reciprocal + one Newton step (~1e-8 rel error); no VPU divide.
    inv = pl.reciprocal(denom, approx=True)
    inv = inv * (2.0 - denom * inv)
    out_ref[...] = (e * inv).astype(out_ref.dtype)


def _round_up(x, m):
    return ((x + m - 1) // m) * m


def _device_caps():
    """Best-effort TPU generation sniffing (safe defaults if unknown)."""
    kind = ""
    try:
        kind = jax.devices()[0].device_kind.lower()
    except Exception:
        pass
    is_v5e = ("v5 lite" in kind) or ("v5e" in kind) or ("v5litepod" in kind)
    # v7x has 2 TensorCores per chip -> want >= 2 "parallel" grid steps.
    multi_core = "v7" in kind
    tb_cap = 128 if is_v5e else 256   # v6e/v7x MXU is 2x256: feed 256-row LHS
    return tb_cap, multi_core


def multi_ensemble_decoder(inputs, params, *, num_decoder,
                           mxu_dtype=jnp.bfloat16):
    """inputs: (B, input_size) float32. params: PyTorch-convention Linear
    weights/biases (W: (out, in), b: (out,)). mxu_dtype controls matmul
    operand precision (bf16 = full-rate MXU path, f32 = exact)."""
    B, In = inputs.shape
    H = params["Wh_w"].shape[0]
    O = params["Wo_w"].shape[0]

    LANE, SUB = 128, 8
    In_p = _round_up(In, LANE)
    H_p = _round_up(H, LANE)
    O_p = _round_up(O, LANE)

    tb_cap, multi_core = _device_caps()
    B_p = _round_up(B, SUB)
    TB = min(B_p, tb_cap)
    B_p = _round_up(B_p, TB)
    if multi_core and B_p // TB < 2 and B_p >= 2 * SUB:
        # Split the batch across both v7x TensorCores.
        TB = _round_up(B_p // 2, SUB)
        B_p = _round_up(B_p, TB)
    grid = (B_p // TB,)

    f32 = jnp.float32
    x_p = jnp.zeros((B_p, In_p), f32).at[:B, :In].set(inputs.astype(f32))

    # Pre-transpose + zero-pad weights so the kernel computes plain x @ W.
    # Zero padding of In/H contributes exactly 0 (padded ht lanes stay
    # tanh(0)=0 and feed 0 onward). Weights are cast to the MXU dtype.
    # TODO(synk): for multi-thousand H on v7x, stream Wh^T in column tiles
    # (bf16 + emit_pipeline/manual DMA) instead of one resident (H_p,H_p) block.
    wi_t = jnp.zeros((In_p, H_p), f32).at[:In, :H].set(
        params["Wi_w"].T).astype(mxu_dtype)
    wh_t = jnp.zeros((H_p, H_p), f32).at[:H, :H].set(
        params["Wh_w"].T).astype(mxu_dtype)
    wo_t = jnp.zeros((H_p, O_p), f32).at[:H, :O].set(
        params["Wo_w"].T).astype(mxu_dtype)
    # Folded recurrence bias (bi + bh): one operand, one VALU add (f32).
    bih = jnp.zeros((1, H_p), f32).at[0, :H].set(
        params["Wi_b"] + params["Wh_b"])
    # Padded output lanes get the most negative f32 -> softmax weight exactly 0.
    bo = jnp.full((1, O_p), jnp.finfo(f32).min, f32).at[0, :O].set(
        params["Wo_b"])

    # Explicit VMEM budget (scoped-limit binds first on v7x's 64 MiB).
    w_bytes = jnp.dtype(mxu_dtype).itemsize
    needed = (2 * TB * (In_p + O_p) * 4                          # x/out tiles (2x buffered)
              + 2 * (In_p * H_p + H_p * H_p + H_p * O_p) * w_bytes
              + 2 * (H_p + O_p) * 4                              # biases
              + 4 * TB * H_p * 4)                                # in-kernel temporaries
    vmem_limit = int(min(64 << 20, max(32 << 20, 2 * needed)))

    kernel = functools.partial(_decoder_kernel, num_decoder=num_decoder,
                               mxu_dtype=mxu_dtype)
    cparams = pltpu.CompilerParams(dimension_semantics=("parallel",),
                                   vmem_limit_bytes=vmem_limit)
    out_shape = jax.ShapeDtypeStruct((B_p, O_p), jnp.float32)

    def call(single_buffer_weights):
        if single_buffer_weights:
            # Constant index_map -> the block never changes; double-buffering
            # invariant weights is pure VMEM waste (matters on v7x's 64 MiB).
            def wspec(shape):
                return pl.BlockSpec(shape, lambda i: (0, 0),
                                    pipeline_mode=pl.Buffered(1))
        else:
            def wspec(shape):
                return pl.BlockSpec(shape, lambda i: (0, 0))
        in_specs = [
            pl.BlockSpec((TB, In_p), lambda i: (i, 0)),   # inputs tile
            wspec((In_p, H_p)),                           # Wi^T   (resident)
            wspec((1, H_p)),                              # bi+bh  (folded)
            wspec((H_p, H_p)),                            # Wh^T   (resident)
            wspec((H_p, O_p)),                            # Wo^T   (resident)
            wspec((1, O_p)),                              # bo
        ]
        return pl.pallas_call(
            kernel,
            out_shape=out_shape,
            grid=grid,
            in_specs=in_specs,
            out_specs=pl.BlockSpec((TB, O_p), lambda i: (i, 0)),
            compiler_params=cparams,
        )(x_p, wi_t, bih, wh_t, wo_t, bo)

    try:
        out_p = call(single_buffer_weights=True)
    except Exception:
        # Fallback if this jax build rejects BlockSpec(pipeline_mode=...):
        # default double-buffered invariant blocks, identical correctness.
        out_p = call(single_buffer_weights=False)

    # Slice the lane-dense padded result back to the logical shape.
    return out_p[:B, :O]


def _reference(inputs, params, *, num_decoder):
    """Plain-JAX reference of the same (typo-fixed) semantics."""
    B = inputs.shape[0]
    H = params["Wh_w"].shape[0]
    ht = jnp.zeros((B, H), jnp.float32)
    out = None
    for _ in range(num_decoder):
        ht = jnp.tanh(ht @ params["Wh_w"].T + params["Wh_b"]
                      + inputs @ params["Wi_w"].T + params["Wi_b"])
        logits = ht @ params["Wo_w"].T + params["Wo_b"]
        out = jax.nn.softmax(logits, axis=1)
    return out


def init_params(key, input_size, hidden_size, output_size):
    ks = jax.random.split(key, 6)
    scale = 0.1
    return {
        "Wh_w": scale * jax.random.normal(ks[0], (hidden_size, hidden_size), jnp.float32),
        "Wh_b": scale * jax.random.normal(ks[1], (hidden_size,), jnp.float32),
        "Wi_w": scale * jax.random.normal(ks[2], (hidden_size, input_size), jnp.float32),
        "Wi_b": scale * jax.random.normal(ks[3], (hidden_size,), jnp.float32),
        "Wo_w": scale * jax.random.normal(ks[4], (output_size, hidden_size), jnp.float32),
        "Wo_b": scale * jax.random.normal(ks[5], (output_size,), jnp.float32),
    }


if __name__ == "__main__":
    num_decoder = 3
    batch = 8
    input_size = 32
    hidden_size = 32
    output_size = 16

    key = jax.random.PRNGKey(0)
    k_in, k_p = jax.random.split(key)
    inputs = jax.random.normal(k_in, (batch, input_size), jnp.float32)
    params = init_params(k_p, input_size, hidden_size, output_size)

    ref = _reference(inputs, params, num_decoder=num_decoder)

    # Exact f32-MXU path: must match the reference to 1e-5.
    out = multi_ensemble_decoder(inputs, params, num_decoder=num_decoder,
                                 mxu_dtype=jnp.float32)
    out = jax.block_until_ready(out)
    assert out.shape == (batch, output_size)
    assert jnp.allclose(out, ref, atol=1e-5, rtol=1e-5), "f32 path mismatch"
    assert jnp.allclose(jnp.sum(out, axis=1), jnp.ones((batch,)), atol=1e-4)

    # Full-rate bf16-MXU path (production default): looser tolerance.
    out_bf16 = multi_ensemble_decoder(inputs, params, num_decoder=num_decoder,
                                      mxu_dtype=jnp.bfloat16)
    out_bf16 = jax.block_until_ready(out_bf16)
    assert out_bf16.shape == (batch, output_size)
    assert jnp.allclose(out_bf16, ref, atol=2e-2, rtol=2e-2), "bf16 path mismatch"
    assert jnp.allclose(jnp.sum(out_bf16, axis=1), jnp.ones((batch,)), atol=1e-4)

    print("KERNEL_OK")
</pallas_src>

<mosaic_0001>
module attributes {stable_mosaic.version = 11 : i64} {
  func.func @_decoder_kernel(%arg0: i32, %arg1: memref<8x128xf32, #tpu.memory_space<vmem>>, %arg2: memref<128x128xf32, #tpu.memory_space<vmem>>, %arg3: memref<1x128xf32, #tpu.memory_space<vmem>>, %arg4: memref<128x128xf32, #tpu.memory_space<vmem>>, %arg5: memref<128x128xf32, #tpu.memory_space<vmem>>, %arg6: memref<1x128xf32, #tpu.memory_space<vmem>>, %arg7: memref<8x128xf32, #tpu.memory_space<vmem>>) attributes {dimension_semantics = [#tpu.dimension_semantics<parallel>], iteration_bounds = array<i64: 1>, scalar_prefetch = 0 : i64, scratch_operands = 0 : i64, tpu.core_type = #tpu.core_type<tc>, window_params = [{transform_indices = @transform_0, window_bounds = array<i64: 8, 128>}, {pipeline_mode = #tpu.pipeline_mode<synchronous>, transform_indices = @transform_1, window_bounds = array<i64: 128, 128>}, {pipeline_mode = #tpu.pipeline_mode<synchronous>, transform_indices = @transform_2, window_bounds = array<i64: 1, 128>}, {pipeline_mode = #tpu.pipeline_mode<synchronous>, transform_indices = @transform_3, window_bounds = array<i64: 128, 128>}, {pipeline_mode = #tpu.pipeline_mode<synchronous>, transform_indices = @transform_4, window_bounds = array<i64: 128, 128>}, {pipeline_mode = #tpu.pipeline_mode<synchronous>, transform_indices = @transform_5, window_bounds = array<i64: 1, 128>}, {transform_indices = @transform_6, window_bounds = array<i64: 8, 128>}]} {
    %c0 = arith.constant 0 : index
    %c0_0 = arith.constant 0 : index
    %0 = vector.load %arg1[%c0, %c0_0] : memref<8x128xf32, #tpu.memory_space<vmem>>, vector<8x128xf32>
    %c0_1 = arith.constant 0 : index
    %c0_2 = arith.constant 0 : index
    %1 = vector.load %arg2[%c0_1, %c0_2] : memref<128x128xf32, #tpu.memory_space<vmem>>, vector<128x128xf32>
    %cst = arith.constant dense<0.000000e+00> : vector<8x128xf32>
    %2 = tpu.matmul %0, %1, %cst {dimension_numbers = #tpu.dot_dimension_numbers<[1], [0], [0], [1], [0, 0, 1, 1], [], []>} : vector<8x128xf32>, vector<128x128xf32>, vector<8x128xf32> -> vector<8x128xf32>
    %c0_3 = arith.constant 0 : index
    %c0_4 = arith.constant 0 : index
    %3 = vector.load %arg3[%c0_3, %c0_4] : memref<1x128xf32, #tpu.memory_space<vmem>>, vector<1x128xf32>
    %4 = vector.broadcast %3 : vector<1x128xf32> to vector<8x128xf32>
    %5 = arith.addf %2, %4 : vector<8x128xf32>
    %6 = math.tanh %5 : vector<8x128xf32>
    %c0_5 = arith.constant 0 : index
    %c0_6 = arith.constant 0 : index
    %7 = vector.load %arg4[%c0_5, %c0_6] : memref<128x128xf32, #tpu.memory_space<vmem>>, vector<128x128xf32>
    %c0_i32 = arith.constant 0 : i32
    %cst_7 = arith.constant dense<0.000000e+00> : vector<8x128xf32>
    %8 = tpu.matmul %6, %7, %cst_7 {dimension_numbers = #tpu.dot_dimension_numbers<[1], [0], [0], [1], [0, 0, 1, 1], [], []>} : vector<8x128xf32>, vector<128x128xf32>, vector<8x128xf32> -> vector<8x128xf32>
    %9 = arith.addf %8, %5 : vector<8x128xf32>
    %10 = math.tanh %9 : vector<8x128xf32>
    %c1_i32 = arith.constant 1 : i32
    %cst_8 = arith.constant dense<0.000000e+00> : vector<8x128xf32>
    %11 = tpu.matmul %10, %7, %cst_8 {dimension_numbers = #tpu.dot_dimension_numbers<[1], [0], [0], [1], [0, 0, 1, 1], [], []>} : vector<8x128xf32>, vector<128x128xf32>, vector<8x128xf32> -> vector<8x128xf32>
    %12 = arith.addf %11, %5 : vector<8x128xf32>
    %13 = math.tanh %12 : vector<8x128xf32>
    %c0_9 = arith.constant 0 : index
    %c0_10 = arith.constant 0 : index
    %14 = vector.load %arg5[%c0_9, %c0_10] : memref<128x128xf32, #tpu.memory_space<vmem>>, vector<128x128xf32>
    %cst_11 = arith.constant dense<0.000000e+00> : vector<8x128xf32>
    %15 = tpu.matmul %13, %14, %cst_11 {dimension_numbers = #tpu.dot_dimension_numbers<[1], [0], [0], [1], [0, 0, 1, 1], [], []>} : vector<8x128xf32>, vector<128x128xf32>, vector<8x128xf32> -> vector<8x128xf32>
    %c0_12 = arith.constant 0 : index
    %c0_13 = arith.constant 0 : index
    %16 = vector.load %arg6[%c0_12, %c0_13] : memref<1x128xf32, #tpu.memory_space<vmem>>, vector<1x128xf32>
    %17 = vector.broadcast %16 : vector<1x128xf32> to vector<8x128xf32>
    %18 = arith.addf %15, %17 : vector<8x128xf32>
    %cst_14 = arith.constant dense<0xFF800000> : vector<8xf32>
    %19 = vector.multi_reduction <maximumf>, %18, %cst_14 [1] : vector<8x128xf32> to vector<8xf32>
    %20 = vector.shape_cast %19 : vector<8xf32> to vector<8x1xf32>
    %21 = vector.broadcast %20 : vector<8x1xf32> to vector<8x128xf32>
    %22 = arith.subf %18, %21 : vector<8x128xf32>
    %23 = math.exp %22 : vector<8x128xf32>
    %cst_15 = arith.constant dense<0.000000e+00> : vector<8xf32>
    %24 = vector.multi_reduction <add>, %23, %cst_15 [1] : vector<8x128xf32> to vector<8xf32>
    %25 = vector.shape_cast %24 : vector<8xf32> to vector<8x1xf32>
    %26 = tpu.reciprocal %25 {approx = true} : vector<8x1xf32> -> vector<8x1xf32>
    %27 = arith.mulf %25, %26 : vector<8x1xf32>
    %cst_16 = arith.constant 2.000000e+00 : f32
    %28 = vector.broadcast %cst_16 : f32 to vector<8x1xf32>
    %29 = arith.subf %28, %27 : vector<8x1xf32>
    %30 = arith.mulf %26, %29 : vector<8x1xf32>
    %31 = vector.broadcast %30 : vector<8x1xf32> to vector<8x128xf32>
    %32 = arith.mulf %23, %31 : vector<8x128xf32>
    %c0_17 = arith.constant 0 : index
    %c0_18 = arith.constant 0 : index
    %33 = vector.load %arg7[%c0_17, %c0_18] : memref<8x128xf32, #tpu.memory_space<vmem>>, vector<8x128xf32>
    tpu.vector_store %arg7[%c0_17, %c0_18], %32 {strides = array<i32>} : memref<8x128xf32, #tpu.memory_space<vmem>>, vector<8x128xf32>,
    return
  }
  func.func @transform_0(%arg0: i32) -> (i32, i32) {
    %c0_i32 = arith.constant 0 : i32
    %c0_i32_0 = arith.constant 0 : i32
    return %arg0, %c0_i32 : i32, i32
  }
  func.func @transform_1(%arg0: i32) -> (i32, i32) {
    %c0_i32 = arith.constant 0 : i32
    %c0_i32_0 = arith.constant 0 : i32
    %c0_i32_1 = arith.constant 0 : i32
    return %c0_i32, %c0_i32_0 : i32, i32
  }
  func.func @transform_2(%arg0: i32) -> (i32, i32) {
    %c0_i32 = arith.constant 0 : i32
    %c0_i32_0 = arith.constant 0 : i32
    %c0_i32_1 = arith.constant 0 : i32
    return %c0_i32, %c0_i32_0 : i32, i32
  }
  func.func @transform_3(%arg0: i32) -> (i32, i32) {
    %c0_i32 = arith.constant 0 : i32
    %c0_i32_0 = arith.constant 0 : i32
    %c0_i32_1 = arith.constant 0 : i32
    return %c0_i32, %c0_i32_0 : i32, i32
  }
  func.func @transform_4(%arg0: i32) -> (i32, i32) {
    %c0_i32 = arith.constant 0 : i32
    %c0_i32_0 = arith.constant 0 : i32
    %c0_i32_1 = arith.constant 0 : i32
    return %c0_i32, %c0_i32_0 : i32, i32
  }
  func.func @transform_5(%arg0: i32) -> (i32, i32) {
    %c0_i32 = arith.constant 0 : i32
    %c0_i32_0 = arith.constant 0 : i32
    %c0_i32_1 = arith.constant 0 : i32
    return %c0_i32, %c0_i32_0 : i32, i32
  }
  func.func @transform_6(%arg0: i32) -> (i32, i32) {
    %c0_i32 = arith.constant 0 : i32
    %c0_i32_0 = arith.constant 0 : i32
    return %arg0, %c0_i32 : i32, i32
  }
}

module attributes {stable_mosaic.version = 11 : i64} {
  func.func @_decoder_kernel(%arg0: i32, %arg1: memref<8x128xf32, #tpu.memory_space<vmem>>, %arg2: memref<128x128xf32, #tpu.memory_space<vmem>>, %arg3: memref<1x128xf32, #tpu.memory_space<vmem>>, %arg4: memref<128x128xf32, #tpu.memory_space<vmem>>, %arg5: memref<128x128xf32, #tpu.memory_space<vmem>>, %arg6: memref<1x128xf32, #tpu.memory_space<vmem>>, %arg7: memref<8x128xf32, #tpu.memory_space<vmem>>) attributes {dimension_semantics = [#tpu.dimension_semantics<parallel>], iteration_bounds = array<i64: 1>, scalar_prefetch = 0 : i64, scratch_operands = 0 : i64, tpu.core_type = #tpu.core_type<tc>, window_params = [{transform_indices = @transform_0, window_bounds = array<i64: 8, 128>}, {pipeline_mode = #tpu.pipeline_mode<synchronous>, transform_indices = @transform_1, window_bounds = array<i64: 128, 128>}, {pipeline_mode = #tpu.pipeline_mode<synchronous>, transform_indices = @transform_2, window_bounds = array<i64: 1, 128>}, {pipeline_mode = #tpu.pipeline_mode<synchronous>, transform_indices = @transform_3, window_bounds = array<i64: 128, 128>}, {pipeline_mode = #tpu.pipeline_mode<synchronous>, transform_indices = @transform_4, window_bounds = array<i64: 128, 128>}, {pipeline_mode = #tpu.pipeline_mode<synchronous>, transform_indices = @transform_5, window_bounds = array<i64: 1, 128>}, {transform_indices = @transform_6, window_bounds = array<i64: 8, 128>}]} {
    %c0 = arith.constant 0 : index
    %c0_0 = arith.constant 0 : index
    %0 = vector.load %arg1[%c0, %c0_0] : memref<8x128xf32, #tpu.memory_space<vmem>>, vector<8x128xf32>
    %c0_1 = arith.constant 0 : index
    %c0_2 = arith.constant 0 : index
    %1 = vector.load %arg2[%c0_1, %c0_2] : memref<128x128xf32, #tpu.memory_space<vmem>>, vector<128x128xf32>
    %cst = arith.constant dense<0.000000e+00> : vector<8x128xf32>
    %2 = tpu.matmul %0, %1, %cst {dimension_numbers = #tpu.dot_dimension_numbers<[1], [0], [0], [1], [0, 0, 1, 1], [], []>} : vector<8x128xf32>, vector<128x128xf32>, vector<8x128xf32> -> vector<8x128xf32>
    %c0_3 = arith.constant 0 : index
    %c0_4 = arith.constant 0 : index
    %3 = vector.load %arg3[%c0_3, %c0_4] : memref<1x128xf32, #tpu.memory_space<vmem>>, vector<1x128xf32>
    %4 = vector.broadcast %3 : vector<1x128xf32> to vector<8x128xf32>
    %5 = arith.addf %2, %4 : vector<8x128xf32>
    %6 = math.tanh %5 : vector<8x128xf32>
    %c0_5 = arith.constant 0 : index
    %c0_6 = arith.constant 0 : index
    %7 = vector.load %arg4[%c0_5, %c0_6] : memref<128x128xf32, #tpu.memory_space<vmem>>, vector<128x128xf32>
    %c0_i32 = arith.constant 0 : i32
    %cst_7 = arith.constant dense<0.000000e+00> : vector<8x128xf32>
    %8 = tpu.matmul %6, %7, %cst_7 {dimension_numbers = #tpu.dot_dimension_numbers<[1], [0], [0], [1], [0, 0, 1, 1], [], []>} : vector<8x128xf32>, vector<128x128xf32>, vector<8x128xf32> -> vector<8x128xf32>
    %9 = arith.addf %8, %5 : vector<8x128xf32>
    %10 = math.tanh %9 : vector<8x128xf32>
    %c1_i32 = arith.constant 1 : i32
    %cst_8 = arith.constant dense<0.000000e+00> : vector<8x128xf32>
    %11 = tpu.matmul %10, %7, %cst_8 {dimension_numbers = #tpu.dot_dimension_numbers<[1], [0], [0], [1], [0, 0, 1, 1], [], []>} : vector<8x128xf32>, vector<128x128xf32>, vector<8x128xf32> -> vector<8x128xf32>
    %12 = arith.addf %11, %5 : vector<8x128xf32>
    %13 = math.tanh %12 : vector<8x128xf32>
    %c0_9 = arith.constant 0 : index
    %c0_10 = arith.constant 0 : index
    %14 = vector.load %arg5[%c0_9, %c0_10] : memref<128x128xf32, #tpu.memory_space<vmem>>, vector<128x128xf32>
    %cst_11 = arith.constant dense<0.000000e+00> : vector<8x128xf32>
    %15 = tpu.matmul %13, %14, %cst_11 {dimension_numbers = #tpu.dot_dimension_numbers<[1], [0], [0], [1], [0, 0, 1, 1], [], []>} : vector<8x128xf32>, vector<128x128xf32>, vector<8x128xf32> -> vector<8x128xf32>
    %c0_12 = arith.constant 0 : index
    %c0_13 = arith.constant 0 : index
    %16 = vector.load %arg6[%c0_12, %c0_13] : memref<1x128xf32, #tpu.memory_space<vmem>>, vector<1x128xf32>
    %17 = vector.broadcast %16 : vector<1x128xf32> to vector<8x128xf32>
    %18 = arith.addf %15, %17 : vector<8x128xf32>
    %cst_14 = arith.constant dense<0xFF800000> : vector<8xf32>
    %19 = vector.multi_reduction <maximumf>, %18, %cst_14 [1] : vector<8x128xf32> to vector<8xf32>
    %20 = vector.shape_cast %19 : vector<8xf32> to vector<8x1xf32>
    %21 = vector.broadcast %20 : vector<8x1xf32> to vector<8x128xf32>
    %22 = arith.subf %18, %21 : vector<8x128xf32>
    %23 = math.exp %22 : vector<8x128xf32>
    %cst_15 = arith.constant dense<0.000000e+00> : vector<8xf32>
    %24 = vector.multi_reduction <add>, %23, %cst_15 [1] : vector<8x128xf32> to vector<8xf32>
    %25 = vector.shape_cast %24 : vector<8xf32> to vector<8x1xf32>
    %26 = tpu.reciprocal %25 {approx = true} : vector<8x1xf32> -> vector<8x1xf32>
    %27 = arith.mulf %25, %26 : vector<8x1xf32>
    %cst_16 = arith.constant 2.000000e+00 : f32
    %28 = vector.broadcast %cst_16 : f32 to vector<8x1xf32>
    %29 = arith.subf %28, %27 : vector<8x1xf32>
    %30 = arith.mulf %26, %29 : vector<8x1xf32>
    %31 = vector.broadcast %30 : vector<8x1xf32> to vector<8x128xf32>
    %32 = arith.mulf %23, %31 : vector<8x128xf32>
    %c0_17 = arith.constant 0 : index
    %c0_18 = arith.constant 0 : index
    %33 = vector.load %arg7[%c0_17, %c0_18] : memref<8x128xf32, #tpu.memory_space<vmem>>, vector<8x128xf32>
    tpu.vector_store %arg7[%c0_17, %c0_18], %32 {strides = array<i32>} : memref<8x128xf32, #tpu.memory_space<vmem>>, vector<8x128xf32>,
    return
  }
  func.func @transform_0(%arg0: i32) -> (i32, i32) {
    %c0_i32 = arith.constant 0 : i32
    %c0_i32_0 = arith.constant 0 : i32
    return %arg0, %c0_i32 : i32, i32
  }
  func.func @transform_1(%arg0: i32) -> (i32, i32) {
    %c0_i32 = arith.constant 0 : i32
    %c0_i32_0 = arith.constant 0 : i32
    %c0_i32_1 = arith.constant 0 : i32
    return %c0_i32, %c0_i32_0 : i32, i32
  }
  func.func @transform_2(%arg0: i32) -> (i32, i32) {
    %c0_i32 = arith.constant 0 : i32
    %c0_i32_0 = arith.constant 0 : i32
    %c0_i32_1 = arith.constant 0 : i32
    return %c0_i32, %c0_i32_0 : i32, i32
  }
  func.func @transform_3(%arg0: i32) -> (i32, i32) {
    %c0_i32 = arith.constant 0 : i32
    %c0_i32_0 = arith.constant 0 : i32
    %c0_i32_1 = arith.constant 0 : i32
    return %c0_i32, %c0_i32_0 : i32, i32
  }
  func.func @transform_4(%arg0: i32) -> (i32, i32) {
    %c0_i32 = arith.constant 0 : i32
    %c0_i32_0 = arith.constant 0 : i32
    %c0_i32_1 = arith.constant 0 : i32
    return %c0_i32, %c0_i32_0 : i32, i32
  }
  func.func @transform_5(%arg0: i32) -> (i32, i32) {
    %c0_i32 = arith.constant 0 : i32
    %c0_i32_0 = arith.constant 0 : i32
    %c0_i32_1 = arith.constant 0 : i32
    return %c0_i32, %c0_i32_0 : i32, i32
  }
  func.func @transform_6(%arg0: i32) -> (i32, i32) {
    %c0_i32 = arith.constant 0 : i32
    %c0_i32_0 = arith.constant 0 : i32
    return %arg0, %c0_i32 : i32, i32
  }
}

</mosaic_0001>

<llo_original>
// kernel: tpu_custom_call.1
$region0: #{tpu_custom_call.1}
  #allocation0 [shape = 'u32[]', space=smem, size = 0x4, offset = 0x4, fixed_abs, tag = 'smem constant byte address 0x4 - core index']
  #allocation1 [shape = 'u32[72,128]{1,0:T(1,128)}', space=vmem, size = 0x9000, scoped, tag = 'internal scratch']
  %s0 = inlined_call_operand.hbm [shape: f32[8,128], index: 0, kind: input, shape index: {}]
  %s1 = inlined_call_operand.hbm [shape: f32[128,128], index: 1, kind: input, shape index: {}]
  %s2 = inlined_call_operand.vmem [shape: f32[1,128], index: 2, kind: input, shape index: {}]
  %s3 = inlined_call_operand.hbm [shape: f32[128,128], index: 3, kind: input, shape index: {}]
  %s4 = inlined_call_operand.hbm [shape: f32[128,128], index: 4, kind: input, shape index: {}]
  %s5 = inlined_call_operand.vmem [shape: f32[1,128], index: 5, kind: input, shape index: {}]
  %s6 = inlined_call_operand.hbm [shape: f32[8,128], index: 6, kind: output, shape index: {}]
  %s7 = sld [smem:[#allocation0]]
  $region50: #{tpu_custom_call.1} parent=0
    _
  %s9 = ssub.s32 1, %s7
  %s10 = scalar_select 0, %s9, %s7
  $region1: #{tpu_custom_call.1} parent=0
    #allocation2 [shape = 'u8[4096]{0}', space=vmem, size = 0x1000, scoped, tag = 'input window, operand 0, single buffered']
    #allocation3 [shape = 's32[1]{0}', space=sflag, size = 0x4, scoped, tag = 'scoped memory for tpu_custom_call.1']
    #allocation4 [shape = 's32[1]{0}', space=sflag, size = 0x4, scoped, tag = 'scoped memory for tpu_custom_call.1']
    #allocation5 [shape = 'u8[65536]{0}', space=vmem, size = 0x10000, scoped, tag = 'input window, operand 1, single buffered']
    #allocation6 [shape = 's32[1]{0}', space=sflag, size = 0x4, scoped, tag = 'scoped memory for tpu_custom_call.1']
    #allocation7 [shape = 'u8[65536]{0}', space=vmem, size = 0x10000, scoped, tag = 'input window, operand 3, single buffered']
    #allocation8 [shape = 'u8[65536]{0}', space=vmem, size = 0x10000, scoped, tag = 'input window, operand 4, single buffered']
    #allocation9 [shape = 's32[1]{0}', space=sflag, size = 0x4, scoped, tag = 'scoped memory for tpu_custom_call.1']
    #allocation10 [shape = 'u8[4096]{0}', space=vmem, size = 0x1000, scoped, tag = 'output window, operand 0, single buffered']
    %11 = vsyncpa [#allocation3], 0
    %12 = vsyncpa [#allocation6], 0
    %13 = vsyncpa [#allocation9], 0
    %14 = vsyncpa [#allocation4], 0
    // Predicated region
    $region2: #{tpu_custom_call.1} parent=1 // pred_check
      _
    $region3: #{tpu_custom_call.1} parent=1 // pred_check_branch
      %16 = sbr.rel (0) target = $region5
    $region4: #{tpu_custom_call.1} parent=1 // pred_region
      %18 = vsyncadd [#allocation3], 0
      %s20 = sshll.u32 %s0, 4
      %s21 = int_to_ptr.hbm [resolvable:$true] %s20
      %s22 = sshll.u32 [#allocation2], 4
      %s23 = int_to_ptr.vmem [resolvable:$true] %s22
      %25 = dma.hbm_to_vmem [thread:$0]  %s21, 128, %s23, [#allocation3]
    $region5: #{tpu_custom_call.1} parent=1 // pred_fallthru
      _
    // Predicated region
    $region6: #{tpu_custom_call.1} parent=1 // pred_check
      _
    $region7: #{tpu_custom_call.1} parent=1 // pred_check_branch
      %27 = sbr.rel (0) target = $region9
    $region8: #{tpu_custom_call.1} parent=1 // pred_region
      %29 = vsyncadd [#allocation6], 0
      %s30 = sshll.u32 %s1, 4
      %s31 = int_to_ptr.hbm [resolvable:$true] %s30
      %s32 = sshll.u32 [#allocation5], 4
      %s33 = int_to_ptr.vmem [resolvable:$true] %s32
      %38 = dma.hbm_to_vmem [thread:$0]  %s31, 2048, %s33, [#allocation6], 128, 128, 8
    $region9: #{tpu_custom_call.1} parent=1 // pred_fallthru
      _
    // Predicated region
    $region10: #{tpu_custom_call.1} parent=1 // pred_check
      _
    $region11: #{tpu_custom_call.1} parent=1 // pred_check_branch
      %40 = sbr.rel (0) target = $region13
    $region12: #{tpu_custom_call.1} parent=1 // pred_region
      _
    $region13: #{tpu_custom_call.1} parent=1 // pred_fallthru
      _
    // Predicated region
    $region14: #{tpu_custom_call.1} parent=1 // pred_check
      _
    $region15: #{tpu_custom_call.1} parent=1 // pred_check_branch
      %42 = sbr.rel (0) target = $region17
    $region16: #{tpu_custom_call.1} parent=1 // pred_region
      %44 = vsyncadd [#allocation6], 0
      %s45 = sshll.u32 %s3, 4
      %s46 = int_to_ptr.hbm [resolvable:$true] %s45
      %s47 = sshll.u32 [#allocation7], 4
      %s48 = int_to_ptr.vmem [resolvable:$true] %s47
      %53 = dma.hbm_to_vmem [thread:$0]  %s46, 2048, %s48, [#allocation6], 128, 128, 8
    $region17: #{tpu_custom_call.1} parent=1 // pred_fallthru
      _
    // Predicated region
    $region18: #{tpu_custom_call.1} parent=1 // pred_check
      _
    $region19: #{tpu_custom_call.1} parent=1 // pred_check_branch
      %55 = sbr.rel (0) target = $region21
    $region20: #{tpu_custom_call.1} parent=1 // pred_region
      %57 = vsyncadd [#allocation9], 0
      %s58 = sshll.u32 %s4, 4
      %s59 = int_to_ptr.hbm [resolvable:$true] %s58
      %s60 = sshll.u32 [#allocation8], 4
      %s61 = int_to_ptr.vmem [resolvable:$true] %s60
      %66 = dma.hbm_to_vmem [thread:$0]  %s59, 2048, %s61, [#allocation9], 128, 128, 8
    $region21: #{tpu_custom_call.1} parent=1 // pred_fallthru
      _
    // Predicated region
    $region22: #{tpu_custom_call.1} parent=1 // pred_check
      _
    $region23: #{tpu_custom_call.1} parent=1 // pred_check_branch
      %68 = sbr.rel (0) target = $region25
    $region24: #{tpu_custom_call.1} parent=1 // pred_region
      _
    $region25: #{tpu_custom_call.1} parent=1 // pred_fallthru
      _
    // Predicated region
    $region26: #{tpu_custom_call.1} parent=1 // pred_check
      _
    $region27: #{tpu_custom_call.1} parent=1 // pred_check_branch
      %70 = sbr.rel (0) target = $region29
    $region28: #{tpu_custom_call.1} parent=1 // pred_region
      %72 = dma.done [#allocation3], 128
    $region29: #{tpu_custom_call.1} parent=1 // pred_fallthru
      _
    // Predicated region
    $region30: #{tpu_custom_call.1} parent=1 // pred_check
      _
    $region31: #{tpu_custom_call.1} parent=1 // pred_check_branch
      %74 = sbr.rel (0) target = $region33
    $region32: #{tpu_custom_call.1} parent=1 // pred_region
      %76 = dma.done [#allocation6], 2048
    $region33: #{tpu_custom_call.1} parent=1 // pred_fallthru
      _
    // Predicated region
    $region34: #{tpu_custom_call.1} parent=1 // pred_check
      _
    $region35: #{tpu_custom_call.1} parent=1 // pred_check_branch
      %78 = sbr.rel (0) target = $region37
    $region36: #{tpu_custom_call.1} parent=1 // pred_region
      %80 = dma.done [#allocation6], 2048
    $region37: #{tpu_custom_call.1} parent=1 // pred_fallthru
      _
    // Predicated region
    $region38: #{tpu_custom_call.1} parent=1 // pred_check
      _
    $region39: #{tpu_custom_call.1} parent=1 // pred_check_branch
      %82 = sbr.rel (0) target = $region41
    $region40: #{tpu_custom_call.1} parent=1 // pred_region
      %84 = dma.done [#allocation9], 2048
    $region41: #{tpu_custom_call.1} parent=1 // pred_fallthru
      _
    %v85 = vld [vmem:[#allocation2] sm:$0xff]
    %v86 = vld [vmem:[#allocation5] sm:$0xff]
    %v87 = vld [vmem:[#allocation5 + $0x8] sm:$0xff]
    %v88 = vld [vmem:[#allocation5 + $0x10] sm:$0xff]
    %v89 = vld [vmem:[#allocation5 + $0x18] sm:$0xff]
    %v90 = vld [vmem:[#allocation5 + $0x20] sm:$0xff]
    %v91 = vld [vmem:[#allocation5 + $0x28] sm:$0xff]
    %v92 = vld [vmem:[#allocation5 + $0x30] sm:$0xff]
    %v93 = vld [vmem:[#allocation5 + $0x38] sm:$0xff]
    %v94 = vld [vmem:[#allocation5 + $0x40] sm:$0xff]
    %v95 = vld [vmem:[#allocation5 + $0x48] sm:$0xff]
    %v96 = vld [vmem:[#allocation5 + $0x50] sm:$0xff]
    %v97 = vld [vmem:[#allocation5 + $0x58] sm:$0xff]
    %v98 = vld [vmem:[#allocation5 + $0x60] sm:$0xff]
    %v99 = vld [vmem:[#allocation5 + $0x68] sm:$0xff]
    %v100 = vld [vmem:[#allocation5 + $0x70] sm:$0xff]
    %v101 = vld [vmem:[#allocation5 + $0x78] sm:$0xff]
    %v102 = vld [vmem:[%s2] sm:$0x1]
    %v104 = vperm.slane %v102, 0
    %106 = vmatpush.msra.mxu0 %v101
    %107 = vmatpush.msra.mxu0 %v100
    %108 = vmatpush.msra.mxu0 %v99
    %109 = vmatpush.msra.mxu0 %v98
    %110 = vmatpush.msra.mxu0 %v97
    %111 = vmatpush.msra.mxu0 %v96
    %112 = vmatpush.msra.mxu0 %v95
    %113 = vmatpush.msra.mxu0 %v94
    %114 = vmatpush.msra.mxu0 %v93
    %115 = vmatpush.msra.mxu0 %v92
    %116 = vmatpush.msra.mxu0 %v91
    %117 = vmatpush.msra.mxu0 %v90
    %118 = vmatpush.msra.mxu0 %v89
    %119 = vmatpush.msra.mxu0 %v88
    %120 = vmatpush.msra.mxu0 %v87
    %121 = vmatpush.msra.mxu0 %v86
    %122 = vmatmul.f32.gmra.mxu0 %v85
    %v123 = vpop.f32.mrf.mxu0
    %v124 = vadd.f32 %v104, %v123
    %125 = vdwg.mxu0
    %v126 = vtanh.pop %v124
    %v127 = vld [vmem:[#allocation7] sm:$0xff]
    %v128 = vld [vmem:[#allocation7 + $0x8] sm:$0xff]
    %v129 = vld [vmem:[#allocation7 + $0x10] sm:$0xff]
    %v130 = vld [vmem:[#allocation7 + $0x18] sm:$0xff]
    %v131 = vld [vmem:[#allocation7 + $0x20] sm:$0xff]
    %v132 = vld [vmem:[#allocation7 + $0x28] sm:$0xff]
    %v133 = vld [vmem:[#allocation7 + $0x30] sm:$0xff]
    %v134 = vld [vmem:[#allocation7 + $0x38] sm:$0xff]
    %v135 = vld [vmem:[#allocation7 + $0x40] sm:$0xff]
    %v136 = vld [vmem:[#allocation7 + $0x48] sm:$0xff]
    %v137 = vld [vmem:[#allocation7 + $0x50] sm:$0xff]
    %v138 = vld [vmem:[#allocation7 + $0x58] sm:$0xff]
    %v139 = vld [vmem:[#allocation7 + $0x60] sm:$0xff]
    %v140 = vld [vmem:[#allocation7 + $0x68] sm:$0xff]
    %v141 = vld [vmem:[#allocation7 + $0x70] sm:$0xff]
    %v142 = vld [vmem:[#allocation7 + $0x78] sm:$0xff]
    %143 = vmatpush.msra.mxu0 %v142
    %144 = vmatpush.msra.mxu0 %v141
    %145 = vmatpush.msra.mxu0 %v140
    %146 = vmatpush.msra.mxu0 %v139
    %147 = vmatpush.msra.mxu0 %v138
    %148 = vmatpush.msra.mxu0 %v137
    %149 = vmatpush.msra.mxu0 %v136
    %150 = vmatpush.msra.mxu0 %v135
    %151 = vmatpush.msra.mxu0 %v134
    %152 = vmatpush.msra.mxu0 %v133
    %153 = vmatpush.msra.mxu0 %v132
    %154 = vmatpush.msra.mxu0 %v131
    %155 = vmatpush.msra.mxu0 %v130
    %156 = vmatpush.msra.mxu0 %v129
    %157 = vmatpush.msra.mxu0 %v128
    %158 = vmatpush.msra.mxu0 %v127
    %159 = vmatmul.f32.gmra.mxu0 %v126
    %v160 = vpop.f32.mrf.mxu0
    %v161 = vadd.f32 %v124, %v160
    %162 = vdwg.mxu0
    %v163 = vtanh.pop %v161
    %164 = vmatpush.msra.mxu0 %v142
    %165 = vmatpush.msra.mxu0 %v141
    %166 = vmatpush.msra.mxu0 %v140
    %167 = vmatpush.msra.mxu0 %v139
    %168 = vmatpush.msra.mxu0 %v138
    %169 = vmatpush.msra.mxu0 %v137
    %170 = vmatpush.msra.mxu0 %v136
    %171 = vmatpush.msra.mxu0 %v135
    %172 = vmatpush.msra.mxu0 %v134
    %173 = vmatpush.msra.mxu0 %v133
    %174 = vmatpush.msra.mxu0 %v132
    %175 = vmatpush.msra.mxu0 %v131
    %176 = vmatpush.msra.mxu0 %v130
    %177 = vmatpush.msra.mxu0 %v129
    %178 = vmatpush.msra.mxu0 %v128
    %179 = vmatpush.msra.mxu0 %v127
    %180 = vmatmul.f32.gmra.mxu0 %v163
    %v181 = vpop.f32.mrf.mxu0
    %v182 = vadd.f32 %v124, %v181
    %183 = vdwg.mxu0
    %v184 = vtanh.pop %v182
    %v185 = vld [vmem:[#allocation8] sm:$0xff]
    %v186 = vld [vmem:[#allocation8 + $0x8] sm:$0xff]
    %v187 = vld [vmem:[#allocation8 + $0x10] sm:$0xff]
    %v188 = vld [vmem:[#allocation8 + $0x18] sm:$0xff]
    %v189 = vld [vmem:[#allocation8 + $0x20] sm:$0xff]
    %v190 = vld [vmem:[#allocation8 + $0x28] sm:$0xff]
    %v191 = vld [vmem:[#allocation8 + $0x30] sm:$0xff]
    %v192 = vld [vmem:[#allocation8 + $0x38] sm:$0xff]
    %v193 = vld [vmem:[#allocation8 + $0x40] sm:$0xff]
    %v194 = vld [vmem:[#allocation8 + $0x48] sm:$0xff]
    %v195 = vld [vmem:[#allocation8 + $0x50] sm:$0xff]
    %v196 = vld [vmem:[#allocation8 + $0x58] sm:$0xff]
    %v197 = vld [vmem:[#allocation8 + $0x60] sm:$0xff]
    %v198 = vld [vmem:[#allocation8 + $0x68] sm:$0xff]
    %v199 = vld [vmem:[#allocation8 + $0x70] sm:$0xff]
    %v200 = vld [vmem:[#allocation8 + $0x78] sm:$0xff]
    %v201 = vld [vmem:[%s5] sm:$0x1]
    %v203 = vperm.slane %v201, 0
    %205 = vmatpush.msra.mxu0 %v200
    %206 = vmatpush.msra.mxu0 %v199
    %207 = vmatpush.msra.mxu0 %v198
    %208 = vmatpush.msra.mxu0 %v197
    %209 = vmatpush.msra.mxu0 %v196
    %210 = vmatpush.msra.mxu0 %v195
    %211 = vmatpush.msra.mxu0 %v194
    %212 = vmatpush.msra.mxu0 %v193
    %213 = vmatpush.msra.mxu0 %v192
    %214 = vmatpush.msra.mxu0 %v191
    %215 = vmatpush.msra.mxu0 %v190
    %216 = vmatpush.msra.mxu0 %v189
    %217 = vmatpush.msra.mxu0 %v188
    %218 = vmatpush.msra.mxu0 %v187
    %219 = vmatpush.msra.mxu0 %v186
    %220 = vmatpush.msra.mxu0 %v185
    %221 = vmatmul.f32.gmra.mxu0 %v184
    %v222 = vpop.f32.mrf.mxu0
    %v223 = vadd.f32 %v203, %v222
    %224 = vdwg.mxu0
    %225 = vmax.xlane.f32.xlu0 %v223
    %v226 = vpop.xlane.xlu0 %225
    %v227 = vsub.f32 %v223, %v226
    %v228 = vmul.f32 %v227, 1.442695
    %v229 = vpow.pop %v228
    %230 = vadd.xlane.f32.xlu0 %v229
    %v231 = vpop.xlane.xlu0 %230
    %v232 = vrcp.pop %v231
    %v233 = vmul.f32 %v231, %v232
    %v234 = vsub.f32 2.0, %v233
    %v235 = vmul.f32 %v232, %v234
    %v236 = vmul.f32 %v229, %v235
    %237 = vst [vmem:[#allocation10] sm:$0xff] %v236
    // Predicated region
    $region42: #{tpu_custom_call.1} parent=1 // pred_check
      _
    $region43: #{tpu_custom_call.1} parent=1 // pred_check_branch
      %239 = sbr.rel (0) target = $region45
    $region44: #{tpu_custom_call.1} parent=1 // pred_region
      %241 = vsyncadd [#allocation4], 0
      %s243 = sshll.u32 [#allocation10], 4
      %s244 = int_to_ptr.vmem [resolvable:$true] %s243
      %s245 = sshll.u32 %s6, 4
      %s246 = int_to_ptr.hbm [resolvable:$true] %s245
      %248 = dma.vmem_to_hbm [thread:$0]  %s244, 128, %s246, [#allocation4]
    $region45: #{tpu_custom_call.1} parent=1 // pred_fallthru
      _
    // Predicated region
    $region46: #{tpu_custom_call.1} parent=1 // pred_check
      _
    $region47: #{tpu_custom_call.1} parent=1 // pred_check_branch
      %250 = sbr.rel (0) target = $region49
    $region48: #{tpu_custom_call.1} parent=1 // pred_region
      %252 = dma.done [#allocation4], 128
    $region49: #{tpu_custom_call.1} parent=1 // pred_fallthru
      _
    %253 = vsyncpa [#allocation3], 1
    %254 = vsyncpa [#allocation6], 1
    %255 = vsyncpa [#allocation9], 1
    %256 = vsyncpa [#allocation4], 1

// kernel: tpu_custom_call.1
$region0: #{tpu_custom_call.1}
  #allocation0 [shape = 'u32[]', space=smem, size = 0x4, offset = 0x4, fixed_abs, tag = 'smem constant byte address 0x4 - core index']
  #allocation1 [shape = 'u32[72,128]{1,0:T(1,128)}', space=vmem, size = 0x9000, scoped, tag = 'internal scratch']
  %s0 = inlined_call_operand.hbm [shape: f32[8,128], index: 0, kind: input, shape index: {}]
  %s1 = inlined_call_operand.hbm [shape: f32[128,128], index: 1, kind: input, shape index: {}]
  %s2 = inlined_call_operand.vmem [shape: f32[1,128], index: 2, kind: input, shape index: {}]
  %s3 = inlined_call_operand.hbm [shape: f32[128,128], index: 3, kind: input, shape index: {}]
  %s4 = inlined_call_operand.hbm [shape: f32[128,128], index: 4, kind: input, shape index: {}]
  %s5 = inlined_call_operand.vmem [shape: f32[1,128], index: 5, kind: input, shape index: {}]
  %s6 = inlined_call_operand.hbm [shape: f32[8,128], index: 6, kind: output, shape index: {}]
  %s7 = sld [smem:[#allocation0]]
  $region50: #{tpu_custom_call.1} parent=0
    _
  %s9 = ssub.s32 1, %s7
  %s10 = scalar_select 0, %s9, %s7
  $region1: #{tpu_custom_call.1} parent=0
    #allocation2 [shape = 'u8[4096]{0}', space=vmem, size = 0x1000, scoped, tag = 'input window, operand 0, single buffered']
    #allocation3 [shape = 's32[1]{0}', space=sflag, size = 0x4, scoped, tag = 'scoped memory for tpu_custom_call.1']
    #allocation4 [shape = 's32[1]{0}', space=sflag, size = 0x4, scoped, tag = 'scoped memory for tpu_custom_call.1']
    #allocation5 [shape = 'u8[65536]{0}', space=vmem, size = 0x10000, scoped, tag = 'input window, operand 1, single buffered']
    #allocation6 [shape = 's32[1]{0}', space=sflag, size = 0x4, scoped, tag = 'scoped memory for tpu_custom_call.1']
    #allocation7 [shape = 'u8[65536]{0}', space=vmem, size = 0x10000, scoped, tag = 'input window, operand 3, single buffered']
    #allocation8 [shape = 'u8[65536]{0}', space=vmem, size = 0x10000, scoped, tag = 'input window, operand 4, single buffered']
    #allocation9 [shape = 's32[1]{0}', space=sflag, size = 0x4, scoped, tag = 'scoped memory for tpu_custom_call.1']
    #allocation10 [shape = 'u8[4096]{0}', space=vmem, size = 0x1000, scoped, tag = 'output window, operand 0, single buffered']
    %11 = vsyncpa [#allocation3], 0
    %12 = vsyncpa [#allocation6], 0
    %13 = vsyncpa [#allocation9], 0
    %14 = vsyncpa [#allocation4], 0
    // Predicated region
    $region2: #{tpu_custom_call.1} parent=1 // pred_check
      _
    $region3: #{tpu_custom_call.1} parent=1 // pred_check_branch
      %16 = sbr.rel (0) target = $region5
    $region4: #{tpu_custom_call.1} parent=1 // pred_region
      %18 = vsyncadd [#allocation3], 0
      %s20 = sshll.u32 %s0, 4
      %s21 = int_to_ptr.hbm [resolvable:$true] %s20
      %s22 = sshll.u32 [#allocation2], 4
      %s23 = int_to_ptr.vmem [resolvable:$true] %s22
      %25 = dma.hbm_to_vmem [thread:$0]  %s21, 128, %s23, [#allocation3]
    $region5: #{tpu_custom_call.1} parent=1 // pred_fallthru
      _
    // Predicated region
    $region6: #{tpu_custom_call.1} parent=1 // pred_check
      _
    $region7: #{tpu_custom_call.1} parent=1 // pred_check_branch
      %27 = sbr.rel (0) target = $region9
    $region8: #{tpu_custom_call.1} parent=1 // pred_region
      %29 = vsyncadd [#allocation6], 0
      %s30 = sshll.u32 %s1, 4
      %s31 = int_to_ptr.hbm [resolvable:$true] %s30
      %s32 = sshll.u32 [#allocation5], 4
      %s33 = int_to_ptr.vmem [resolvable:$true] %s32
      %38 = dma.hbm_to_vmem [thread:$0]  %s31, 2048, %s33, [#allocation6], 128, 128, 8
    $region9: #{tpu_custom_call.1} parent=1 // pred_fallthru
      _
    // Predicated region
    $region10: #{tpu_custom_call.1} parent=1 // pred_check
      _
    $region11: #{tpu_custom_call.1} parent=1 // pred_check_branch
      %40 = sbr.rel (0) target = $region13
    $region12: #{tpu_custom_call.1} parent=1 // pred_region
      _
    $region13: #{tpu_custom_call.1} parent=1 // pred_fallthru
      _
    // Predicated region
    $region14: #{tpu_custom_call.1} parent=1 // pred_check
      _
    $region15: #{tpu_custom_call.1} parent=1 // pred_check_branch
      %42 = sbr.rel (0) target = $region17
    $region16: #{tpu_custom_call.1} parent=1 // pred_region
      %44 = vsyncadd [#allocation6], 0
      %s45 = sshll.u32 %s3, 4
      %s46 = int_to_ptr.hbm [resolvable:$true] %s45
      %s47 = sshll.u32 [#allocation7], 4
      %s48 = int_to_ptr.vmem [resolvable:$true] %s47
      %53 = dma.hbm_to_vmem [thread:$0]  %s46, 2048, %s48, [#allocation6], 128, 128, 8
    $region17: #{tpu_custom_call.1} parent=1 // pred_fallthru
      _
    // Predicated region
    $region18: #{tpu_custom_call.1} parent=1 // pred_check
      _
    $region19: #{tpu_custom_call.1} parent=1 // pred_check_branch
      %55 = sbr.rel (0) target = $region21
    $region20: #{tpu_custom_call.1} parent=1 // pred_region
      %57 = vsyncadd [#allocation9], 0
      %s58 = sshll.u32 %s4, 4
      %s59 = int_to_ptr.hbm [resolvable:$true] %s58
      %s60 = sshll.u32 [#allocation8], 4
      %s61 = int_to_ptr.vmem [resolvable:$true] %s60
      %66 = dma.hbm_to_vmem [thread:$0]  %s59, 2048, %s61, [#allocation9], 128, 128, 8
    $region21: #{tpu_custom_call.1} parent=1 // pred_fallthru
      _
    // Predicated region
    $region22: #{tpu_custom_call.1} parent=1 // pred_check
      _
    $region23: #{tpu_custom_call.1} parent=1 // pred_check_branch
      %68 = sbr.rel (0) target = $region25
    $region24: #{tpu_custom_call.1} parent=1 // pred_region
      _
    $region25: #{tpu_custom_call.1} parent=1 // pred_fallthru
      _
    // Predicated region
    $region26: #{tpu_custom_call.1} parent=1 // pred_check
      _
    $region27: #{tpu_custom_call.1} parent=1 // pred_check_branch
      %70 = sbr.rel (0) target = $region29
    $region28: #{tpu_custom_call.1} parent=1 // pred_region
      %72 = dma.done [#allocation3], 128
    $region29: #{tpu_custom_call.1} parent=1 // pred_fallthru
      _
    // Predicated region
    $region30: #{tpu_custom_call.1} parent=1 // pred_check
      _
    $region31: #{tpu_custom_call.1} parent=1 // pred_check_branch
      %74 = sbr.rel (0) target = $region33
    $region32: #{tpu_custom_call.1} parent=1 // pred_region
      %76 = dma.done [#allocation6], 2048
    $region33: #{tpu_custom_call.1} parent=1 // pred_fallthru
      _
    // Predicated region
    $region34: #{tpu_custom_call.1} parent=1 // pred_check
      _
    $region35: #{tpu_custom_call.1} parent=1 // pred_check_branch
      %78 = sbr.rel (0) target = $region37
    $region36: #{tpu_custom_call.1} parent=1 // pred_region
      %80 = dma.done [#allocation6], 2048
    $region37: #{tpu_custom_call.1} parent=1 // pred_fallthru
      _
    // Predicated region
    $region38: #{tpu_custom_call.1} parent=1 // pred_check
      _
    $region39: #{tpu_custom_call.1} parent=1 // pred_check_branch
      %82 = sbr.rel (0) target = $region41
    $region40: #{tpu_custom_call.1} parent=1 // pred_region
      %84 = dma.done [#allocation9], 2048
    $region41: #{tpu_custom_call.1} parent=1 // pred_fallthru
      _
    %v85 = vld [vmem:[#allocation2] sm:$0xff]
    %v86 = vld [vmem:[#allocation5] sm:$0xff]
    %v87 = vld [vmem:[#allocation5 + $0x8] sm:$0xff]
    %v88 = vld [vmem:[#allocation5 + $0x10] sm:$0xff]
    %v89 = vld [vmem:[#allocation5 + $0x18] sm:$0xff]
    %v90 = vld [vmem:[#allocation5 + $0x20] sm:$0xff]
    %v91 = vld [vmem:[#allocation5 + $0x28] sm:$0xff]
    %v92 = vld [vmem:[#allocation5 + $0x30] sm:$0xff]
    %v93 = vld [vmem:[#allocation5 + $0x38] sm:$0xff]
    %v94 = vld [vmem:[#allocation5 + $0x40] sm:$0xff]
    %v95 = vld [vmem:[#allocation5 + $0x48] sm:$0xff]
    %v96 = vld [vmem:[#allocation5 + $0x50] sm:$0xff]
    %v97 = vld [vmem:[#allocation5 + $0x58] sm:$0xff]
    %v98 = vld [vmem:[#allocation5 + $0x60] sm:$0xff]
    %v99 = vld [vmem:[#allocation5 + $0x68] sm:$0xff]
    %v100 = vld [vmem:[#allocation5 + $0x70] sm:$0xff]
    %v101 = vld [vmem:[#allocation5 + $0x78] sm:$0xff]
    %v102 = vld [vmem:[%s2] sm:$0x1]
    %v104 = vperm.slane %v102, 0
    %106 = vmatpush.msra.mxu0 %v101
    %107 = vmatpush.msra.mxu0 %v100
    %108 = vmatpush.msra.mxu0 %v99
    %109 = vmatpush.msra.mxu0 %v98
    %110 = vmatpush.msra.mxu0 %v97
    %111 = vmatpush.msra.mxu0 %v96
    %112 = vmatpush.msra.mxu0 %v95
    %113 = vmatpush.msra.mxu0 %v94
    %114 = vmatpush.msra.mxu0 %v93
    %115 = vmatpush.msra.mxu0 %v92
    %116 = vmatpush.msra.mxu0 %v91
    %117 = vmatpush.msra.mxu0 %v90
    %118 = vmatpush.msra.mxu0 %v89
    %119 = vmatpush.msra.mxu0 %v88
    %120 = vmatpush.msra.mxu0 %v87
    %121 = vmatpush.msra.mxu0 %v86
    %122 = vmatmul.f32.gmra.mxu0 %v85
    %v123 = vpop.f32.mrf.mxu0
    %v124 = vadd.f32 %v104, %v123
    %125 = vdwg.mxu0
    %v126 = vtanh.pop %v124
    %v127 = vld [vmem:[#allocation7] sm:$0xff]
    %v128 = vld [vmem:[#allocation7 + $0x8] sm:$0xff]
    %v129 = vld [vmem:[#allocation7 + $0x10] sm:$0xff]
    %v130 = vld [vmem:[#allocation7 + $0x18] sm:$0xff]
    %v131 = vld [vmem:[#allocation7 + $0x20] sm:$0xff]
    %v132 = vld [vmem:[#allocation7 + $0x28] sm:$0xff]
    %v133 = vld [vmem:[#allocation7 + $0x30] sm:$0xff]
    %v134 = vld [vmem:[#allocation7 + $0x38] sm:$0xff]
    %v135 = vld [vmem:[#allocation7 + $0x40] sm:$0xff]
    %v136 = vld [vmem:[#allocation7 + $0x48] sm:$0xff]
    %v137 = vld [vmem:[#allocation7 + $0x50] sm:$0xff]
    %v138 = vld [vmem:[#allocation7 + $0x58] sm:$0xff]
    %v139 = vld [vmem:[#allocation7 + $0x60] sm:$0xff]
    %v140 = vld [vmem:[#allocation7 + $0x68] sm:$0xff]
    %v141 = vld [vmem:[#allocation7 + $0x70] sm:$0xff]
    %v142 = vld [vmem:[#allocation7 + $0x78] sm:$0xff]
    %143 = vmatpush.msra.mxu0 %v142
    %144 = vmatpush.msra.mxu0 %v141
    %145 = vmatpush.msra.mxu0 %v140
    %146 = vmatpush.msra.mxu0 %v139
    %147 = vmatpush.msra.mxu0 %v138
    %148 = vmatpush.msra.mxu0 %v137
    %149 = vmatpush.msra.mxu0 %v136
    %150 = vmatpush.msra.mxu0 %v135
    %151 = vmatpush.msra.mxu0 %v134
    %152 = vmatpush.msra.mxu0 %v133
    %153 = vmatpush.msra.mxu0 %v132
    %154 = vmatpush.msra.mxu0 %v131
    %155 = vmatpush.msra.mxu0 %v130
    %156 = vmatpush.msra.mxu0 %v129
    %157 = vmatpush.msra.mxu0 %v128
    %158 = vmatpush.msra.mxu0 %v127
    %159 = vmatmul.f32.gmra.mxu0 %v126
    %v160 = vpop.f32.mrf.mxu0
    %v161 = vadd.f32 %v124, %v160
    %162 = vdwg.mxu0
    %v163 = vtanh.pop %v161
    %164 = vmatpush.msra.mxu0 %v142
    %165 = vmatpush.msra.mxu0 %v141
    %166 = vmatpush.msra.mxu0 %v140
    %167 = vmatpush.msra.mxu0 %v139
    %168 = vmatpush.msra.mxu0 %v138
    %169 = vmatpush.msra.mxu0 %v137
    %170 = vmatpush.msra.mxu0 %v136
    %171 = vmatpush.msra.mxu0 %v135
    %172 = vmatpush.msra.mxu0 %v134
    %173 = vmatpush.msra.mxu0 %v133
    %174 = vmatpush.msra.mxu0 %v132
    %175 = vmatpush.msra.mxu0 %v131
    %176 = vmatpush.msra.mxu0 %v130
    %177 = vmatpush.msra.mxu0 %v129
    %178 = vmatpush.msra.mxu0 %v128
    %179 = vmatpush.msra.mxu0 %v127
    %180 = vmatmul.f32.gmra.mxu0 %v163
    %v181 = vpop.f32.mrf.mxu0
    %v182 = vadd.f32 %v124, %v181
    %183 = vdwg.mxu0
    %v184 = vtanh.pop %v182
    %v185 = vld [vmem:[#allocation8] sm:$0xff]
    %v186 = vld [vmem:[#allocation8 + $0x8] sm:$0xff]
    %v187 = vld [vmem:[#allocation8 + $0x10] sm:$0xff]
    %v188 = vld [vmem:[#allocation8 + $0x18] sm:$0xff]
    %v189 = vld [vmem:[#allocation8 + $0x20] sm:$0xff]
    %v190 = vld [vmem:[#allocation8 + $0x28] sm:$0xff]
    %v191 = vld [vmem:[#allocation8 + $0x30] sm:$0xff]
    %v192 = vld [vmem:[#allocation8 + $0x38] sm:$0xff]
    %v193 = vld [vmem:[#allocation8 + $0x40] sm:$0xff]
    %v194 = vld [vmem:[#allocation8 + $0x48] sm:$0xff]
    %v195 = vld [vmem:[#allocation8 + $0x50] sm:$0xff]
    %v196 = vld [vmem:[#allocation8 + $0x58] sm:$0xff]
    %v197 = vld [vmem:[#allocation8 + $0x60] sm:$0xff]
    %v198 = vld [vmem:[#allocation8 + $0x68] sm:$0xff]
    %v199 = vld [vmem:[#allocation8 + $0x70] sm:$0xff]
    %v200 = vld [vmem:[#allocation8 + $0x78] sm:$0xff]
    %v201 = vld [vmem:[%s5] sm:$0x1]
    %v203 = vperm.slane %v201, 0
    %205 = vmatpush.msra.mxu0 %v200
    %206 = vmatpush.msra.mxu0 %v199
    %207 = vmatpush.msra.mxu0 %v198
    %208 = vmatpush.msra.mxu0 %v197
    %209 = vmatpush.msra.mxu0 %v196
    %210 = vmatpush.msra.mxu0 %v195
    %211 = vmatpush.msra.mxu0 %v194
    %212 = vmatpush.msra.mxu0 %v193
    %213 = vmatpush.msra.mxu0 %v192
    %214 = vmatpush.msra.mxu0 %v191
    %215 = vmatpush.msra.mxu0 %v190
    %216 = vmatpush.msra.mxu0 %v189
    %217 = vmatpush.msra.mxu0 %v188
    %218 = vmatpush.msra.mxu0 %v187
    %219 = vmatpush.msra.mxu0 %v186
    %220 = vmatpush.msra.mxu0 %v185
    %221 = vmatmul.f32.gmra.mxu0 %v184
    %v222 = vpop.f32.mrf.mxu0
    %v223 = vadd.f32 %v203, %v222
    %224 = vdwg.mxu0
    %225 = vmax.xlane.f32.xlu0 %v223
    %v226 = vpop.xlane.xlu0 %225
    %v227 = vsub.f32 %v223, %v226
    %v228 = vmul.f32 %v227, 1.442695
    %v229 = vpow.pop %v228
    %230 = vadd.xlane.f32.xlu0 %v229
    %v231 = vpop.xlane.xlu0 %230
    %v232 = vrcp.pop %v231
    %v233 = vmul.f32 %v231, %v232
    %v234 = vsub.f32 2.0, %v233
    %v235 = vmul.f32 %v232, %v234
    %v236 = vmul.f32 %v229, %v235
    %237 = vst [vmem:[#allocation10] sm:$0xff] %v236
    // Predicated region
    $region42: #{tpu_custom_call.1} parent=1 // pred_check
      _
    $region43: #{tpu_custom_call.1} parent=1 // pred_check_branch
      %239 = sbr.rel (0) target = $region45
    $region44: #{tpu_custom_call.1} parent=1 // pred_region
      %241 = vsyncadd [#allocation4], 0
      %s243 = sshll.u32 [#allocation10], 4
      %s244 = int_to_ptr.vmem [resolvable:$true] %s243
      %s245 = sshll.u32 %s6, 4
      %s246 = int_to_ptr.hbm [resolvable:$true] %s245
      %248 = dma.vmem_to_hbm [thread:$0]  %s244, 128, %s246, [#allocation4]
    $region45: #{tpu_custom_call.1} parent=1 // pred_fallthru
      _
    // Predicated region
    $region46: #{tpu_custom_call.1} parent=1 // pred_check
      _
    $region47: #{tpu_custom_call.1} parent=1 // pred_check_branch
      %250 = sbr.rel (0) target = $region49
    $region48: #{tpu_custom_call.1} parent=1 // pred_region
      %252 = dma.done [#allocation4], 128
    $region49: #{tpu_custom_call.1} parent=1 // pred_fallthru
      _
    %253 = vsyncpa [#allocation3], 1
    %254 = vsyncpa [#allocation6], 1
    %255 = vsyncpa [#allocation9], 1
    %256 = vsyncpa [#allocation4], 1

</llo_original>
